<compile_context>
chip_gen: v7x
topology: tpu7x:2x2x1
jax: 0.10.0
libtpu: 0.0.40
codegen_flags: <defaults>
</compile_context>

<pallas_src>
import jax
import jax.numpy as jnp
from jax.experimental import pallas as pl
from jax.experimental.pallas import tpu as pltpu


def _round_up(x, m):
    return (x + m - 1) // m * m


def _choose_tiles(B, S):
    """Pick (TB, TS): big tiles for MXU fill / DMA amortisation, but keep
    n_b >= 2 when the batch allows so v7x's second TensorCore stays busy."""
    TS = min(256, _round_up(S, 16))            # multiple of 16: bf16 sublane pack
    for tb in (64, 32, 16, 8):
        if _round_up(B, tb) // tb >= 2:
            return tb, TS
    return 8, TS


# -----------------------------------------------------------------------------
# Fused kernel: tanh dense -> masked-mean pool (accumulated over the S grid
# axis) -> classifier -> sigmoid.
# -----------------------------------------------------------------------------
def fused_head_kernel(emb_ref, maskn_ref, w1_ref, b1_ref, w2_ref, b2_ref,
                      prob_ref, acc_ref):
    si = pl.program_id(1)

    @pl.when(si == 0)
    def _init():
        acc_ref[...] = jnp.zeros_like(acc_ref)

    # ---- tanh dense: one tall 2D matmul on the MXU (bf16 in, f32 acc) -------
    emb = emb_ref[...]                                    # [TB, TS, Hp] bf16
    tb, ts, hp = emb.shape
    x2d = emb.reshape(tb * ts, hp)                        # layout-free (TS % 16 == 0)
    h2d = jnp.tanh(
        jnp.dot(x2d, w1_ref[...], preferred_element_type=jnp.float32)
        + b1_ref[...])                                    # [TB*TS, Hp] f32
    h = h2d.reshape(tb, ts, hp)

    # ---- masked-mean pooling (mask pre-normalised; resident lane-dense block)
    m = maskn_ref[si]                                     # [TB, TS] f32
    acc_ref[...] += jnp.sum(h * m[:, :, None], axis=1)    # [TB, Hp]

    # ---- epilogue on the last sequence block ---------------------------------
    @pl.when(si == pl.num_programs(1) - 1)
    def _finalize():
        pooled = acc_ref[...].astype(jnp.bfloat16)        # [TB, Hp]
        logits = (jnp.dot(pooled, w2_ref[...],
                          preferred_element_type=jnp.float32)
                  + b2_ref[...])                          # [TB, Lp] f32
        # numerically stable sigmoid via tanh (EUP)
        prob_ref[...] = 0.5 * (jnp.tanh(0.5 * logits) + 1.0)


# -----------------------------------------------------------------------------
# Wrapper: single-pass bf16 embedding gather, one fused pallas_call, O(B) loss.
# -----------------------------------------------------------------------------
def model_forward(input_ids, attention_mask, labels, params):
    """Mirrors Model.forward(input_ids, attention_mask, labels)."""
    word_emb, pos_emb, w1, b1, w2, b2 = params
    B, S = input_ids.shape
    H = word_emb.shape[1]
    L = w2.shape[1]

    TB, TS = _choose_tiles(B, S)
    Bp = _round_up(B, TB)
    Sp = _round_up(_round_up(S, 16), TS)
    Hp = _round_up(H, 128)
    Lp = _round_up(L, 128)
    n_b = Bp // TB
    n_s = Sp // TS

    # --- embedding gather in ONE bf16 pass over [Bp, Sp, Hp]
    word_emb_p = jnp.pad(word_emb, ((0, 0), (0, Hp - H))).astype(jnp.bfloat16)
    pos_emb_p = jnp.pad(pos_emb, ((0, Sp - S), (0, Hp - H))).astype(jnp.bfloat16)
    ids_p = jnp.pad(input_ids, ((0, Bp - B), (0, Sp - S)))   # pad ids -> row 0; masked out
    emb_p = word_emb_p[ids_p] + pos_emb_p[None, :, :]        # [Bp, Sp, Hp] bf16
    # TODO(synk): fuse this row gather into the kernel via PrefetchScalarGridSpec
    #             + pl.Element at production vocab / sequence sizes.

    # --- pre-normalised pooling mask, lane-dense, resident per batch tile
    mask = attention_mask.astype(jnp.float32)
    maskn = mask / (jnp.sum(mask, axis=1, keepdims=True) + 1e-10)
    maskn_p = jnp.pad(maskn, ((0, Bp - B), (0, Sp - S)))       # [Bp, Sp]
    maskn_t = maskn_p.reshape(Bp, n_s, TS).transpose(1, 0, 2)  # [n_s, Bp, TS]

    # --- weights (bf16 MXU feed; biases stay f32)
    w1_p = jnp.pad(w1, ((0, Hp - H), (0, Hp - H))).astype(jnp.bfloat16)
    b1_p = jnp.pad(b1, ((0, 0), (0, Hp - H))).astype(jnp.float32)
    w2_p = jnp.pad(w2, ((0, Hp - H), (0, Lp - L))).astype(jnp.bfloat16)
    b2_p = jnp.pad(b2, ((0, 0), (0, Lp - L))).astype(jnp.float32)

    # Constant weights never change across the grid; single-buffer the big ones
    # once they matter (keeps v7x's 64 MiB VMEM safe at production Hp).
    single_buf = Hp >= 1024

    def _const_spec(shape, single_buffer=False):
        if single_buffer:
            return pl.BlockSpec(shape, lambda bi, si: (0, 0),
                                pipeline_mode=pl.Buffered(1))
        return pl.BlockSpec(shape, lambda bi, si: (0, 0))

    # TODO(synk): add a K-reduction grid axis tiling w1 once Hp >= ~2048 so the
    #             kernel stays inside v7x's 64 MiB VMEM at production widths.

    prob_p = pl.pallas_call(
        fused_head_kernel,
        out_shape=jax.ShapeDtypeStruct((Bp, Lp), jnp.float32),
        grid=(n_b, n_s),
        in_specs=[
            pl.BlockSpec((TB, TS, Hp), lambda bi, si: (bi, si, 0)),   # emb tile
            pl.BlockSpec((n_s, TB, TS), lambda bi, si: (0, bi, 0)),   # maskn (resident)
            _const_spec((Hp, Hp), single_buf),                        # w1 (bf16)
            _const_spec((1, Hp)),                                     # b1
            _const_spec((Hp, Lp), single_buf),                        # w2 (bf16)
            _const_spec((1, Lp)),                                     # b2
        ],
        out_specs=pl.BlockSpec((TB, Lp), lambda bi, si: (bi, 0)),     # lane-dense prob
        scratch_shapes=[pltpu.VMEM((TB, Hp), jnp.float32)],           # pooled acc
        compiler_params=pltpu.CompilerParams(
            dimension_semantics=("parallel", "arbitrary"),
            vmem_limit_bytes=48 << 20),
    )(emb_p, maskn_t, w1_p, b1_p, w2_p, b2_p)

    prob = prob_p[:B, :L]
    if labels is None:
        return prob

    # --- Model's BCE-on-prob[:,0] epilogue: O(B) work, done in plain XLA so the
    #     kernel keeps lane-dense outputs and a fully "parallel" batch axis.
    y = labels.astype(jnp.float32)
    p0 = prob[:, 0]
    loss = -jnp.mean(jnp.log(p0 + 1e-10) * y
                     + jnp.log(1.0 - p0 + 1e-10) * (1.0 - y))
    return loss, prob


# -----------------------------------------------------------------------------
# Pure-JAX reference (same synthetic bf16 encoder head + Model math).
# -----------------------------------------------------------------------------
def reference_forward(input_ids, attention_mask, labels, params):
    word_emb, pos_emb, w1, b1, w2, b2 = params
    emb = (word_emb.astype(jnp.bfloat16)[input_ids]
           + pos_emb.astype(jnp.bfloat16)[None, :, :])
    B, S, H = emb.shape
    h = jnp.tanh(
        jnp.dot(emb.reshape(B * S, H), w1.astype(jnp.bfloat16),
                preferred_element_type=jnp.float32) + b1).reshape(B, S, H)
    mask = attention_mask.astype(jnp.float32)
    maskn = mask / (jnp.sum(mask, axis=1, keepdims=True) + 1e-10)
    pooled = jnp.sum(h * maskn[:, :, None], axis=1)
    logits = jnp.dot(pooled.astype(jnp.bfloat16), w2.astype(jnp.bfloat16),
                     preferred_element_type=jnp.float32) + b2
    prob = jax.nn.sigmoid(logits)
    y = labels.astype(jnp.float32)
    p0 = prob[:, 0]
    loss = -(jnp.log(p0 + 1e-10) * y
             + jnp.log(1.0 - p0 + 1e-10) * (1.0 - y)).mean()
    return loss, prob


if __name__ == "__main__":
    # Small shapes; B and S deliberately NOT tile-aligned so the padding path runs.
    B, S, H, V, L = 12, 24, 32, 64, 2

    key = jax.random.PRNGKey(0)
    k_we, k_pe, k_w1, k_b1, k_w2, k_b2, k_ids, k_lab = jax.random.split(key, 8)

    word_emb = jax.random.normal(k_we, (V, H), jnp.float32) * 0.02
    pos_emb = jax.random.normal(k_pe, (S, H), jnp.float32) * 0.02
    w1 = jax.random.normal(k_w1, (H, H), jnp.float32) * 0.05
    b1 = jax.random.normal(k_b1, (1, H), jnp.float32) * 0.1
    w2 = jax.random.normal(k_w2, (H, L), jnp.float32) * 0.05
    b2 = jax.random.normal(k_b2, (1, L), jnp.float32) * 0.1
    params = (word_emb, pos_emb, w1, b1, w2, b2)

    input_ids = jax.random.randint(k_ids, (B, S), 0, V, jnp.int32)
    attention_mask = (jnp.ones((B, S), jnp.int32)
                      .at[1, S - 3:].set(0)
                      .at[5, S - 6:].set(0))
    labels = jax.random.randint(k_lab, (B,), 0, 2, jnp.int32)

    loss, prob = model_forward(input_ids, attention_mask, labels, params)
    loss = jax.block_until_ready(loss)
    prob = jax.block_until_ready(prob)

    ref_loss, ref_prob = reference_forward(input_ids, attention_mask, labels,
                                           params)
    assert prob.shape == (B, L), prob.shape
    assert jnp.allclose(prob, ref_prob, atol=2e-4), (prob, ref_prob)
    assert jnp.allclose(loss, ref_loss, atol=2e-4), (loss, ref_loss)

    print("KERNEL_OK")
</pallas_src>

<mosaic_0001>
module attributes {stable_mosaic.version = 11 : i64} {
  func.func @fused_head_kernel(%arg0: i32, %arg1: i32, %arg2: memref<8x32x128xbf16, #tpu.memory_space<vmem>>, %arg3: memref<1x8x32xf32, #tpu.memory_space<vmem>>, %arg4: memref<128x128xbf16, #tpu.memory_space<vmem>>, %arg5: memref<1x128xf32, #tpu.memory_space<vmem>>, %arg6: memref<128x128xbf16, #tpu.memory_space<vmem>>, %arg7: memref<1x128xf32, #tpu.memory_space<vmem>>, %arg8: memref<8x128xf32, #tpu.memory_space<vmem>>, %arg9: memref<8x128xf32, #tpu.memory_space<vmem>>) attributes {dimension_semantics = [#tpu.dimension_semantics<parallel>, #tpu.dimension_semantics<arbitrary>], iteration_bounds = array<i64: 2, 1>, scalar_prefetch = 0 : i64, scratch_operands = 1 : i64, tpu.core_type = #tpu.core_type<tc>, window_params = [{transform_indices = @transform_0, window_bounds = array<i64: 8, 32, 128>}, {transform_indices = @transform_1, window_bounds = array<i64: 1, 8, 32>}, {pipeline_mode = #tpu.pipeline_mode<synchronous>, transform_indices = @transform_2, window_bounds = array<i64: 128, 128>}, {pipeline_mode = #tpu.pipeline_mode<synchronous>, transform_indices = @transform_3, window_bounds = array<i64: 1, 128>}, {pipeline_mode = #tpu.pipeline_mode<synchronous>, transform_indices = @transform_4, window_bounds = array<i64: 128, 128>}, {pipeline_mode = #tpu.pipeline_mode<synchronous>, transform_indices = @transform_5, window_bounds = array<i64: 1, 128>}, {transform_indices = @transform_6, window_bounds = array<i64: 8, 128>}]} {
    %c0_i32 = arith.constant 0 : i32
    %0 = arith.cmpi eq, %arg1, %c0_i32 : i32
    %1 = arith.extui %0 : i1 to i32
    %c0_i32_0 = arith.constant 0 : i32
    %2 = arith.cmpi ne, %1, %c0_i32_0 : i32
    scf.if %2 {
      %cst_16 = arith.constant 0.000000e+00 : f32
      %25 = vector.broadcast %cst_16 : f32 to vector<8x128xf32>
      %c0_17 = arith.constant 0 : index
      %c0_18 = arith.constant 0 : index
      %26 = vector.load %arg9[%c0_17, %c0_18] : memref<8x128xf32, #tpu.memory_space<vmem>>, vector<8x128xf32>
      tpu.vector_store %arg9[%c0_17, %c0_18], %25 {strides = array<i32>} : memref<8x128xf32, #tpu.memory_space<vmem>>, vector<8x128xf32>,
    } else {
    }
    %c0 = arith.constant 0 : index
    %c0_1 = arith.constant 0 : index
    %c0_2 = arith.constant 0 : index
    %3 = vector.load %arg2[%c0, %c0_1, %c0_2] : memref<8x32x128xbf16, #tpu.memory_space<vmem>>, vector<8x32x128xbf16>
    %4 = vector.shape_cast %3 : vector<8x32x128xbf16> to vector<256x128xbf16>
    %c0_3 = arith.constant 0 : index
    %c0_4 = arith.constant 0 : index
    %5 = vector.load %arg4[%c0_3, %c0_4] : memref<128x128xbf16, #tpu.memory_space<vmem>>, vector<128x128xbf16>
    %cst = arith.constant dense<0.000000e+00> : vector<256x128xf32>
    %6 = tpu.matmul %4, %5, %cst {dimension_numbers = #tpu.dot_dimension_numbers<[1], [0], [0], [1], [0, 0, 1, 1], [], []>} : vector<256x128xbf16>, vector<128x128xbf16>, vector<256x128xf32> -> vector<256x128xf32>
    %c0_5 = arith.constant 0 : index
    %c0_6 = arith.constant 0 : index
    %7 = vector.load %arg5[%c0_5, %c0_6] : memref<1x128xf32, #tpu.memory_space<vmem>>, vector<1x128xf32>
    %8 = vector.broadcast %7 : vector<1x128xf32> to vector<256x128xf32>
    %9 = arith.addf %6, %8 : vector<256x128xf32>
    %10 = math.tanh %9 : vector<256x128xf32>
    %11 = vector.shape_cast %10 : vector<256x128xf32> to vector<8x32x128xf32>
    %12 = arith.index_cast %arg1 : i32 to index
    %c0_7 = arith.constant 0 : index
    %c0_8 = arith.constant 0 : index
    %13 = vector.load %arg3[%12, %c0_7, %c0_8] : memref<1x8x32xf32, #tpu.memory_space<vmem>>, vector<1x8x32xf32>
    %14 = vector.shape_cast %13 : vector<1x8x32xf32> to vector<8x32xf32>
    %c0_9 = arith.constant 0 : index
    %c0_10 = arith.constant 0 : index
    %15 = vector.load %arg9[%c0_9, %c0_10] : memref<8x128xf32, #tpu.memory_space<vmem>>, vector<8x128xf32>
    %16 = vector.shape_cast %14 : vector<8x32xf32> to vector<8x32x1xf32>
    %17 = vector.broadcast %16 : vector<8x32x1xf32> to vector<8x32x128xf32>
    %18 = arith.mulf %11, %17 : vector<8x32x128xf32>
    %cst_11 = arith.constant dense<0.000000e+00> : vector<8x128xf32>
    %19 = vector.multi_reduction <add>, %18, %cst_11 [1] : vector<8x32x128xf32> to vector<8x128xf32>
    %20 = arith.addf %15, %19 : vector<8x128xf32>
    %c0_12 = arith.constant 0 : index
    %c0_13 = arith.constant 0 : index
    %21 = vector.load %arg9[%c0_12, %c0_13] : memref<8x128xf32, #tpu.memory_space<vmem>>, vector<8x128xf32>
    tpu.vector_store %arg9[%c0_12, %c0_13], %20 {strides = array<i32>} : memref<8x128xf32, #tpu.memory_space<vmem>>, vector<8x128xf32>,
    %c0_i32_14 = arith.constant 0 : i32
    %22 = arith.cmpi eq, %arg1, %c0_i32_14 : i32
    %23 = arith.extui %22 : i1 to i32
    %c0_i32_15 = arith.constant 0 : i32
    %24 = arith.cmpi ne, %23, %c0_i32_15 : i32
    scf.if %24 {
      %c0_16 = arith.constant 0 : index
      %c0_17 = arith.constant 0 : index
      %25 = vector.load %arg9[%c0_16, %c0_17] : memref<8x128xf32, #tpu.memory_space<vmem>>, vector<8x128xf32>
      %26 = arith.truncf %25 : vector<8x128xf32> to vector<8x128xbf16>
      %c0_18 = arith.constant 0 : index
      %c0_19 = arith.constant 0 : index
      %27 = vector.load %arg6[%c0_18, %c0_19] : memref<128x128xbf16, #tpu.memory_space<vmem>>, vector<128x128xbf16>
      %cst_20 = arith.constant dense<0.000000e+00> : vector<8x128xf32>
      %28 = tpu.matmul %26, %27, %cst_20 {dimension_numbers = #tpu.dot_dimension_numbers<[1], [0], [0], [1], [0, 0, 1, 1], [], []>} : vector<8x128xbf16>, vector<128x128xbf16>, vector<8x128xf32> -> vector<8x128xf32>
      %c0_21 = arith.constant 0 : index
      %c0_22 = arith.constant 0 : index
      %29 = vector.load %arg7[%c0_21, %c0_22] : memref<1x128xf32, #tpu.memory_space<vmem>>, vector<1x128xf32>
      %30 = vector.broadcast %29 : vector<1x128xf32> to vector<8x128xf32>
      %31 = arith.addf %28, %30 : vector<8x128xf32>
      %cst_23 = arith.constant 5.000000e-01 : f32
      %32 = vector.broadcast %cst_23 : f32 to vector<8x128xf32>
      %33 = arith.mulf %32, %31 : vector<8x128xf32>
      %34 = math.tanh %33 : vector<8x128xf32>
      %cst_24 = arith.constant 1.000000e+00 : f32
      %35 = vector.broadcast %cst_24 : f32 to vector<8x128xf32>
      %36 = arith.addf %34, %35 : vector<8x128xf32>
      %cst_25 = arith.constant 5.000000e-01 : f32
      %37 = vector.broadcast %cst_25 : f32 to vector<8x128xf32>
      %38 = arith.mulf %37, %36 : vector<8x128xf32>
      %c0_26 = arith.constant 0 : index
      %c0_27 = arith.constant 0 : index
      %39 = vector.load %arg8[%c0_26, %c0_27] : memref<8x128xf32, #tpu.memory_space<vmem>>, vector<8x128xf32>
      tpu.vector_store %arg8[%c0_26, %c0_27], %38 {strides = array<i32>} : memref<8x128xf32, #tpu.memory_space<vmem>>, vector<8x128xf32>,
    } else {
    }
    return
  }
  func.func @transform_0(%arg0: i32, %arg1: i32) -> (i32, i32, i32) {
    %c0_i32 = arith.constant 0 : i32
    %c0_i32_0 = arith.constant 0 : i32
    return %arg0, %arg1, %c0_i32 : i32, i32, i32
  }
  func.func @transform_1(%arg0: i32, %arg1: i32) -> (i32, i32, i32) {
    %c0_i32 = arith.constant 0 : i32
    %c0_i32_0 = arith.constant 0 : i32
    %c0_i32_1 = arith.constant 0 : i32
    return %c0_i32, %arg0, %c0_i32_0 : i32, i32, i32
  }
  func.func @transform_2(%arg0: i32, %arg1: i32) -> (i32, i32) {
    %c0_i32 = arith.constant 0 : i32
    %c0_i32_0 = arith.constant 0 : i32
    %c0_i32_1 = arith.constant 0 : i32
    return %c0_i32, %c0_i32_0 : i32, i32
  }
  func.func @transform_3(%arg0: i32, %arg1: i32) -> (i32, i32) {
    %c0_i32 = arith.constant 0 : i32
    %c0_i32_0 = arith.constant 0 : i32
    %c0_i32_1 = arith.constant 0 : i32
    return %c0_i32, %c0_i32_0 : i32, i32
  }
  func.func @transform_4(%arg0: i32, %arg1: i32) -> (i32, i32) {
    %c0_i32 = arith.constant 0 : i32
    %c0_i32_0 = arith.constant 0 : i32
    %c0_i32_1 = arith.constant 0 : i32
    return %c0_i32, %c0_i32_0 : i32, i32
  }
  func.func @transform_5(%arg0: i32, %arg1: i32) -> (i32, i32) {
    %c0_i32 = arith.constant 0 : i32
    %c0_i32_0 = arith.constant 0 : i32
    %c0_i32_1 = arith.constant 0 : i32
    return %c0_i32, %c0_i32_0 : i32, i32
  }
  func.func @transform_6(%arg0: i32, %arg1: i32) -> (i32, i32) {
    %c0_i32 = arith.constant 0 : i32
    %c0_i32_0 = arith.constant 0 : i32
    return %arg0, %c0_i32 : i32, i32
  }
}

</mosaic_0001>

<llo_original>
// kernel: tpu_custom_call.1
$region0: #{tpu_custom_call.1}
  #allocation0 [shape = 'u32[]', space=smem, size = 0x4, offset = 0x4, fixed_abs, tag = 'smem constant byte address 0x4 - core index']
  #allocation1 [shape = 'u32[144,128]{1,0:T(1,128)}', space=vmem, size = 0x12000, scoped, tag = 'internal scratch']
  #allocation2 [shape = 'f32[8,128]{1,0:T(8,128)}', space=vmem, size = 0x1000, scoped, tag = 'scratch operand']
  %s0 = inlined_call_operand.hbm [shape: bf16[16,32,128], index: 0, kind: input, shape index: {}]
  %s1 = inlined_call_operand.hbm [shape: f32[1,16,32], index: 1, kind: input, shape index: {}]
  %s2 = inlined_call_operand.hbm [shape: bf16[128,128], index: 2, kind: input, shape index: {}]
  %s3 = inlined_call_operand.vmem [shape: f32[1,128], index: 3, kind: input, shape index: {}]
  %s4 = inlined_call_operand.hbm [shape: bf16[128,128], index: 4, kind: input, shape index: {}]
  %s5 = inlined_call_operand.vmem [shape: f32[1,128], index: 5, kind: input, shape index: {}]
  %s6 = inlined_call_operand.hbm [shape: f32[16,128], index: 6, kind: output, shape index: {}]
  %s7 = sld [smem:[#allocation0]]
  $region81: #{tpu_custom_call.1} parent=0
    _
  %s9 = ssub.s32 1, %s7
  %s10 = scalar_select 0, %s9, %s7
  $region1: #{tpu_custom_call.1} parent=0
    #allocation3 [shape = 'u8[131072]{0}', space=vmem, size = 0x20000, scoped, tag = 'input window, operand 0']
    #allocation4 [shape = 's32[2]{0}', space=sflag, size = 0x8, scoped, tag = 'scoped memory for tpu_custom_call.1']
    #allocation5 [shape = 's32[2]{0}', space=sflag, size = 0x8, scoped, tag = 'scoped memory for tpu_custom_call.1']
    #allocation6 [shape = 'u8[8192]{0}', space=vmem, size = 0x2000, scoped, tag = 'input window, operand 1']
    #allocation7 [shape = 's32[2]{0}', space=sflag, size = 0x8, scoped, tag = 'scoped memory for tpu_custom_call.1']
    #allocation8 [shape = 'u8[32768]{0}', space=vmem, size = 0x8000, scoped, tag = 'input window, operand 2, single buffered']
    #allocation9 [shape = 'u8[32768]{0}', space=vmem, size = 0x8000, scoped, tag = 'input window, operand 4, single buffered']
    #allocation10 [shape = 's32[1]{0}', space=sflag, size = 0x4, scoped, tag = 'scoped memory for tpu_custom_call.1']
    #allocation11 [shape = 'u8[8192]{0}', space=vmem, size = 0x2000, scoped, tag = 'output window, operand 0']
    %11 = vsyncpa [#allocation4], 0
    %s12 = scalar_lea.sflag [#allocation4], 1
    %13 = vsyncpa %s12, 0
    %14 = vsyncpa [#allocation7], 0
    %s15 = scalar_lea.sflag [#allocation7], 1
    %16 = vsyncpa %s15, 0
    %17 = vsyncpa [#allocation10], 0
    %18 = vsyncpa [#allocation5], 0
    %s19 = scalar_lea.sflag [#allocation5], 1
    %20 = vsyncpa %s19, 0
    loop: start=0, step=1, limit=4
    $region2: #{tpu_custom_call.1} parent=1 // loop_pre_header
      _
    $region3: #{tpu_custom_call.1} parent=1 // loop_header
      %s22 = sphi 0, %s26
      %p23 = scmp.ge.s32.totalorder %s22, 4
      %s29 = sphi 0, %s41
      %s30 = sphi 0, %s37
      %s31 = sphi 0, %s29
      %s32 = sphi 0, %s30
      %s33 = sphi 0, %s31
      %s34 = sphi 0, %s32
      %s46 = sphi 0, %s48
      %s49 = sphi 0, %s46
      %s50 = sphi 0, %s49
      %s66 = sphi 0, %s50
      %s72 = sphi 0, %s74
      %s75 = sphi 0, %s72
      %s76 = sphi 0, %s75
      %s92 = sphi 0, %s76
      %s96 = sphi 0, %s96
      %s98 = sphi 0, %s96
      %s99 = sphi 0, %s98
      %s113 = sphi 0, %s99
      %s117 = sphi 0, %s117
      %s119 = sphi 0, %s117
      %s120 = sphi 0, %s119
      %s134 = sphi 0, %s120
      %s138 = sphi 0, %s138
      %s140 = sphi 0, %s138
      %s141 = sphi 0, %s140
      %s155 = sphi 0, %s141
      %s159 = sphi 0, %s159
      %s161 = sphi 0, %s159
      %s162 = sphi 0, %s161
      %s176 = sphi 0, %s162
      %s182 = sphi 0, %s184
      %s185 = sphi 0, %s182
      %s186 = sphi 0, %s185
      %s202 = sphi 0, %s186
    $region4: #{tpu_custom_call.1} parent=1 // loop_header_branch
      %25 = sbr.rel (%p23) target = $region8
    $region5: #{tpu_custom_call.1} parent=1 // loop_body
      %s27 = ssub.s32 %s22, 1
      %s28 = ssub.s32 %s22, 2
      %s35 = sadd.s32 1, %s30
      %p36 = scmp.ge.s32.totalorder %s35, 1
      %s37 = scalar_select %p36, 0, %s35
      %s38 = sadd.s32 1, %s29
      %s39 = scalar_select %p36, %s38, %s29
      %p40 = scmp.ge.s32.totalorder %s39, 2
      %s41 = scalar_select %p40, 0, %s39
      %s42 = ssub.s32 %s29, %s41
      %s43 = ssub.s32 %s30, %s37
      %s44 = sor.u32 %s42, %s43
      %p45 = scmp.eq.s32.totalorder %s44, 0
      %s47 = sadd.s32 %s46, 1
      %s48 = scalar_select %p45, %s46, %s47
      %p51 = pneg %p45
      %p52 = scmp.eq.s32.totalorder %s22, 1
      %p53 = por %p51, %p52
      %p54 = scmp.ne.s32.totalorder %s46, %s49
      %p55 = scmp.eq.s32.totalorder %s22, 0
      %p56 = por %p54, %p55
      %p57 = scmp.ne.s32.totalorder %s46, %s49
      %p58 = scmp.eq.s32.totalorder %s27, 1
      %p59 = por %p57, %p58
      %p60 = scmp.ne.s32.totalorder %s49, %s50
      %p61 = scmp.eq.s32.totalorder %s27, 0
      %p62 = por %p60, %p61
      %p63 = scmp.ne.s32.totalorder %s49, %s50
      %p64 = scmp.eq.s32.totalorder %s28, 1
      %p65 = por %p63, %p64
      %p67 = scmp.ne.s32.totalorder %s50, %s66
      %p68 = scmp.eq.s32.totalorder %s28, 0
      %p69 = por %p67, %p68
      %s70 = ssub.s32 %s29, %s41
      %p71 = scmp.eq.s32.totalorder %s70, 0
      %s73 = sadd.s32 %s72, 1
      %s74 = scalar_select %p71, %s72, %s73
      %p77 = pneg %p71
      %p78 = scmp.eq.s32.totalorder %s22, 1
      %p79 = por %p77, %p78
      %p80 = scmp.ne.s32.totalorder %s72, %s75
      %p81 = scmp.eq.s32.totalorder %s22, 0
      %p82 = por %p80, %p81
      %p83 = scmp.ne.s32.totalorder %s72, %s75
      %p84 = scmp.eq.s32.totalorder %s27, 1
      %p85 = por %p83, %p84
      %p86 = scmp.ne.s32.totalorder %s75, %s76
      %p87 = scmp.eq.s32.totalorder %s27, 0
      %p88 = por %p86, %p87
      %p89 = scmp.ne.s32.totalorder %s75, %s76
      %p90 = scmp.eq.s32.totalorder %s28, 1
      %p91 = por %p89, %p90
      %p93 = scmp.ne.s32.totalorder %s76, %s92
      %p94 = scmp.eq.s32.totalorder %s28, 0
      %p95 = por %p93, %p94
      %s97 = sadd.s32 %s96, 1
      %p100 = scmp.eq.s32.totalorder %s22, 1
      %p101 = scmp.ne.s32.totalorder %s96, %s98
      %p102 = scmp.eq.s32.totalorder %s22, 0
      %p103 = por %p101, %p102
      %p104 = scmp.ne.s32.totalorder %s96, %s98
      %p105 = scmp.eq.s32.totalorder %s27, 1
      %p106 = por %p104, %p105
      %p107 = scmp.ne.s32.totalorder %s98, %s99
      %p108 = scmp.eq.s32.totalorder %s27, 0
      %p109 = por %p107, %p108
      %p110 = scmp.ne.s32.totalorder %s98, %s99
      %p111 = scmp.eq.s32.totalorder %s28, 1
      %p112 = por %p110, %p111
      %p114 = scmp.ne.s32.totalorder %s99, %s113
      %p115 = scmp.eq.s32.totalorder %s28, 0
      %p116 = por %p114, %p115
      %s118 = sadd.s32 %s117, 1
      %p121 = scmp.eq.s32.totalorder %s22, 1
      %p122 = scmp.ne.s32.totalorder %s117, %s119
      %p123 = scmp.eq.s32.totalorder %s22, 0
      %p124 = por %p122, %p123
      %p125 = scmp.ne.s32.totalorder %s117, %s119
      %p126 = scmp.eq.s32.totalorder %s27, 1
      %p127 = por %p125, %p126
      %p128 = scmp.ne.s32.totalorder %s119, %s120
      %p129 = scmp.eq.s32.totalorder %s27, 0
      %p130 = por %p128, %p129
      %p131 = scmp.ne.s32.totalorder %s119, %s120
      %p132 = scmp.eq.s32.totalorder %s28, 1
      %p133 = por %p131, %p132
      %p135 = scmp.ne.s32.totalorder %s120, %s134
      %p136 = scmp.eq.s32.totalorder %s28, 0
      %p137 = por %p135, %p136
      %s139 = sadd.s32 %s138, 1
      %p142 = scmp.eq.s32.totalorder %s22, 1
      %p143 = scmp.ne.s32.totalorder %s138, %s140
      %p144 = scmp.eq.s32.totalorder %s22, 0
      %p145 = por %p143, %p144
      %p146 = scmp.ne.s32.totalorder %s138, %s140
      %p147 = scmp.eq.s32.totalorder %s27, 1
      %p148 = por %p146, %p147
      %p149 = scmp.ne.s32.totalorder %s140, %s141
      %p150 = scmp.eq.s32.totalorder %s27, 0
      %p151 = por %p149, %p150
      %p152 = scmp.ne.s32.totalorder %s140, %s141
      %p153 = scmp.eq.s32.totalorder %s28, 1
      %p154 = por %p152, %p153
      %p156 = scmp.ne.s32.totalorder %s141, %s155
      %p157 = scmp.eq.s32.totalorder %s28, 0
      %p158 = por %p156, %p157
      %s160 = sadd.s32 %s159, 1
      %p163 = scmp.eq.s32.totalorder %s22, 1
      %p164 = scmp.ne.s32.totalorder %s159, %s161
      %p165 = scmp.eq.s32.totalorder %s22, 0
      %p166 = por %p164, %p165
      %p167 = scmp.ne.s32.totalorder %s159, %s161
      %p168 = scmp.eq.s32.totalorder %s27, 1
      %p169 = por %p167, %p168
      %p170 = scmp.ne.s32.totalorder %s161, %s162
      %p171 = scmp.eq.s32.totalorder %s27, 0
      %p172 = por %p170, %p171
      %p173 = scmp.ne.s32.totalorder %s161, %s162
      %p174 = scmp.eq.s32.totalorder %s28, 1
      %p175 = por %p173, %p174
      %p177 = scmp.ne.s32.totalorder %s162, %s176
      %p178 = scmp.eq.s32.totalorder %s28, 0
      %p179 = por %p177, %p178
      %s180 = ssub.s32 %s29, %s41
      %p181 = scmp.eq.s32.totalorder %s180, 0
      %s183 = sadd.s32 %s182, 1
      %s184 = scalar_select %p181, %s182, %s183
      %p187 = pneg %p181
      %p188 = scmp.eq.s32.totalorder %s22, 1
      %p189 = por %p187, %p188
      %p190 = scmp.ne.s32.totalorder %s182, %s185
      %p191 = scmp.eq.s32.totalorder %s22, 0
      %p192 = por %p190, %p191
      %p193 = scmp.ne.s32.totalorder %s182, %s185
      %p194 = scmp.eq.s32.totalorder %s27, 1
      %p195 = por %p193, %p194
      %p196 = scmp.ne.s32.totalorder %s185, %s186
      %p197 = scmp.eq.s32.totalorder %s27, 0
      %p198 = por %p196, %p197
      %p199 = scmp.ne.s32.totalorder %s185, %s186
      %p200 = scmp.eq.s32.totalorder %s28, 1
      %p201 = por %p199, %p200
      %p203 = scmp.ne.s32.totalorder %s186, %s202
      %p204 = scmp.eq.s32.totalorder %s28, 0
      %p205 = por %p203, %p204
      %p206 = scmp.le.s32.totalorder 1, %s22
      %p207 = scmp.lt.s32.totalorder %s22, 3
      %p208 = pnand %p206, %p207
      %p209 = pneg %p208
      // Predicated region
      $region9: #{tpu_custom_call.1} parent=5 // pred_check
        _
      $region10: #{tpu_custom_call.1} parent=5 // pred_check_branch
        %211 = sbr.rel (%p208) target = $region12
      $region11: #{tpu_custom_call.1} parent=5 // pred_region
        %s212 = ssub.s32 %s22, 1
        // Predicated region
        $region13: #{tpu_custom_call.1} parent=11 // pred_check
          %p213 = pneg %p109
        $region14: #{tpu_custom_call.1} parent=11 // pred_check_branch
          %215 = sbr.rel (%p213) target = $region16
        $region15: #{tpu_custom_call.1} parent=11 // pred_region
          %s217 = ssub.s32 1024, 1024
          %218 = vsyncadd [#allocation7], %s217
          %s219 = sshll.u32 [#allocation8], 4
          %s220 = int_to_ptr.vmem [resolvable:$true] %s219
          %225 = dma.hbm_to_vmem [thread:$0]  %s2, 1024, %s220, [#allocation7], 64, 64, 4
        $region16: #{tpu_custom_call.1} parent=11 // pred_fallthru
          _
        // Predicated region
        $region17: #{tpu_custom_call.1} parent=11 // pred_check
          %p226 = pneg %p130
        $region18: #{tpu_custom_call.1} parent=11 // pred_check_branch
          %228 = sbr.rel (%p226) target = $region20
        $region19: #{tpu_custom_call.1} parent=11 // pred_region
          _
        $region20: #{tpu_custom_call.1} parent=11 // pred_fallthru
          _
        // Predicated region
        $region21: #{tpu_custom_call.1} parent=11 // pred_check
          %p229 = pneg %p151
        $region22: #{tpu_custom_call.1} parent=11 // pred_check_branch
          %231 = sbr.rel (%p229) target = $region24
        $region23: #{tpu_custom_call.1} parent=11 // pred_region
          %s233 = ssub.s32 1024, 1024
          %234 = vsyncadd [#allocation10], %s233
          %s235 = sshll.u32 [#allocation9], 4
          %s236 = int_to_ptr.vmem [resolvable:$true] %s235
          %241 = dma.hbm_to_vmem [thread:$0]  %s4, 1024, %s236, [#allocation10], 64, 64, 4
        $region24: #{tpu_custom_call.1} parent=11 // pred_fallthru
          _
        // Predicated region
        $region25: #{tpu_custom_call.1} parent=11 // pred_check
          %p242 = pneg %p172
        $region26: #{tpu_custom_call.1} parent=11 // pred_check_branch
          %244 = sbr.rel (%p242) target = $region28
        $region27: #{tpu_custom_call.1} parent=11 // pred_region
          _
        $region28: #{tpu_custom_call.1} parent=11 // pred_fallthru
          _
      $region12: #{tpu_custom_call.1} parent=5 // pred_fallthru
        _
      %p245 = scmp.lt.s32.totalorder %s22, 2
      // Predicated region
      $region29: #{tpu_custom_call.1} parent=5 // pred_check
        %p246 = pneg %p245
      $region30: #{tpu_custom_call.1} parent=5 // pred_check_branch
        %248 = sbr.rel (%p246) target = $region32
      $region31: #{tpu_custom_call.1} parent=5 // pred_region
        // Predicated region
        $region33: #{tpu_custom_call.1} parent=31 // pred_check
          %p249 = pneg %p56
        $region34: #{tpu_custom_call.1} parent=31 // pred_check_branch
          %251 = sbr.rel (%p249) target = $region36
        $region35: #{tpu_custom_call.1} parent=31 // pred_region
          %s252 = sand.u32 %s46, 1
          %s253 = scalar_lea.sflag [#allocation4], %s252
          %s254 = sand.u32 %s46, 1
          %s255 = smul.addr %s254, 128
          %s256 = scalar_lea.vmem [#allocation3], %s255
          %s257 = smul.u32 8, %s29
          %s258 = smul.u32 4, %s30
          %s260 = ssub.s32 2048, 2048
          %261 = vsyncadd %s253, %s260
          %s262 = smul.addr %s257, 4
          %s263 = sadd.s32 %s258, %s262
          %s264 = smul.addr %s263, 64
          %s265 = scalar_lea.hbm %s0, %s264
          %s266 = sshll.u32 %s256, 4
          %s267 = int_to_ptr.vmem [resolvable:$true] %s266
          %272 = dma.hbm_to_vmem [thread:$0]  %s265, 2048, %s267, %s253, 64, 64, 4
        $region36: #{tpu_custom_call.1} parent=31 // pred_fallthru
          _
        // Predicated region
        $region37: #{tpu_custom_call.1} parent=31 // pred_check
          %p273 = pneg %p82
        $region38: #{tpu_custom_call.1} parent=31 // pred_check_branch
          %275 = sbr.rel (%p273) target = $region40
        $region39: #{tpu_custom_call.1} parent=31 // pred_region
          %s276 = sand.u32 %s22, 1
          %s277 = scalar_lea.sflag [#allocation7], %s276
          %s278 = sand.u32 %s72, 1
          %s279 = smul.addr %s278, 8
          %s280 = scalar_lea.vmem [#allocation6], %s279
          %s282 = ssub.s32 128, 128
          %283 = vsyncadd %s277, %s282
          %s284 = smul.addr %s29, 128
          %s285 = scalar_lea.hbm %s1, %s284
          %s287 = sshll.u32 %s280, 4
          %s288 = int_to_ptr.vmem [resolvable:$true] %s287
          %290 = dma.hbm_to_vmem [thread:$0]  %s285, 128, %s288, %s277
        $region40: #{tpu_custom_call.1} parent=31 // pred_fallthru
          _
      $region32: #{tpu_custom_call.1} parent=5 // pred_fallthru
        _
      %p291 = scmp.le.s32.totalorder 1, %s22
      %p292 = scmp.lt.s32.totalorder %s22, 3
      %p293 = pnand %p291, %p292
      %p294 = pneg %p293
      // Predicated region
      $region41: #{tpu_custom_call.1} parent=5 // pred_check
        _
      $region42: #{tpu_custom_call.1} parent=5 // pred_check_branch
        %296 = sbr.rel (%p293) target = $region44
      $region43: #{tpu_custom_call.1} parent=5 // pred_region
        %s297 = ssub.s32 %s22, 1
        %s298 = sand.u32 %s49, 1
        %s299 = scalar_lea.sflag [#allocation4], %s298
        %s300 = sand.u32 %s49, 1
        %s301 = smul.addr %s300, 128
        %s302 = scalar_lea.vmem [#allocation3], %s301
        // Predicated region
        $region45: #{tpu_custom_call.1} parent=43 // pred_check
          %p303 = pneg %p62
        $region46: #{tpu_custom_call.1} parent=43 // pred_check_branch
          %305 = sbr.rel (%p303) target = $region48
        $region47: #{tpu_custom_call.1} parent=43 // pred_region
          %306 = dma.done %s299, 2048
        $region48: #{tpu_custom_call.1} parent=43 // pred_fallthru
          _
        %s307 = sand.u32 %s27, 1
        %s308 = scalar_lea.sflag [#allocation7], %s307
        %s309 = sand.u32 %s75, 1
        %s310 = smul.addr %s309, 8
        %s311 = scalar_lea.vmem [#allocation6], %s310
        // Predicated region
        $region49: #{tpu_custom_call.1} parent=43 // pred_check
          %p312 = pneg %p88
        $region50: #{tpu_custom_call.1} parent=43 // pred_check_branch
          %314 = sbr.rel (%p312) target = $region52
        $region51: #{tpu_custom_call.1} parent=43 // pred_region
          %315 = dma.done %s308, 128
        $region52: #{tpu_custom_call.1} parent=43 // pred_fallthru
          _
        // Predicated region
        $region53: #{tpu_custom_call.1} parent=43 // pred_check
          %p316 = pneg %p109
        $region54: #{tpu_custom_call.1} parent=43 // pred_check_branch
          %318 = sbr.rel (%p316) target = $region56
        $region55: #{tpu_custom_call.1} parent=43 // pred_region
          %319 = dma.done [#allocation7], 1024
        $region56: #{tpu_custom_call.1} parent=43 // pred_fallthru
          _
        // Predicated region
        $region57: #{tpu_custom_call.1} parent=43 // pred_check
          %p320 = pneg %p151
        $region58: #{tpu_custom_call.1} parent=43 // pred_check_branch
          %322 = sbr.rel (%p320) target = $region60
        $region59: #{tpu_custom_call.1} parent=43 // pred_region
          %323 = dma.done [#allocation10], 1024
        $region60: #{tpu_custom_call.1} parent=43 // pred_fallthru
          _
        %s324 = sand.u32 %s49, 1
        %s325 = scalar_lea.sflag [#allocation4], %s324
        %s326 = sand.u32 %s49, 1
        %s327 = smul.addr %s326, 128
        %s328 = scalar_lea.vmem [#allocation3], %s327
        %p329 = pneg %p62
        %p330 = pneg %p59
        %s331 = sand.u32 %s27, 1
        %s332 = scalar_lea.sflag [#allocation7], %s331
        %s333 = sand.u32 %s75, 1
        %s334 = smul.addr %s333, 8
        %s335 = scalar_lea.vmem [#allocation6], %s334
        %p336 = pneg %p88
        %p337 = pneg %p85
        %p338 = pneg %p109
        %p339 = pneg %p106
        %p340 = pneg %p130
        %p341 = pneg %p127
        %p342 = pneg %p151
        %p343 = pneg %p148
        %p344 = pneg %p172
        %p345 = pneg %p169
        %p346 = pneg %p198
        %p347 = pneg %p195
        %s348 = sand.u32 %s185, 1
        %s349 = scalar_lea.sflag [#allocation5], %s348
        %s350 = sand.u32 %s185, 1
        %s351 = smul.addr %s350, 8
        %s352 = scalar_lea.vmem [#allocation11], %s351
        %s353 = smul.u32 8, %s31
        %s354 = smul.u32 4, %s32
        %p356 = scmp.eq.s32.totalorder %s32, 0
        // Predicated region
        $region61: #{tpu_custom_call.1} parent=43 // pred_check
          %p357 = pneg %p356
        $region62: #{tpu_custom_call.1} parent=43 // pred_check_branch
          %359 = sbr.rel (%p357) target = $region64
        $region63: #{tpu_custom_call.1} parent=43 // pred_region
          %360 = vst [vmem:[#allocation2] sm:$0xff] 0.0
        $region64: #{tpu_custom_call.1} parent=43 // pred_fallthru
          _
        %v361 = vld [vmem:[%s302] sm:$0xf]
        %v362 = vld [vmem:[%s302 + $0x4] sm:$0xf]
        %v363 = vld [vmem:[%s302 + $0x8] sm:$0xf]
        %v364 = vld [vmem:[%s302 + $0xc] sm:$0xf]
        %v365 = vld [vmem:[%s302 + $0x10] sm:$0xf]
        %v366 = vld [vmem:[%s302 + $0x14] sm:$0xf]
        %v367 = vld [vmem:[%s302 + $0x18] sm:$0xf]
        %v368 = vld [vmem:[%s302 + $0x1c] sm:$0xf]
        %v369 = vld [vmem:[%s302 + $0x20] sm:$0xf]
        %v370 = vld [vmem:[%s302 + $0x24] sm:$0xf]
        %v371 = vld [vmem:[%s302 + $0x28] sm:$0xf]
        %v372 = vld [vmem:[%s302 + $0x2c] sm:$0xf]
        %v373 = vld [vmem:[%s302 + $0x30] sm:$0xf]
        %v374 = vld [vmem:[%s302 + $0x34] sm:$0xf]
        %v375 = vld [vmem:[%s302 + $0x38] sm:$0xf]
        %v376 = vld [vmem:[%s302 + $0x3c] sm:$0xf]
        %v377 = vld [vmem:[%s302 + $0x40] sm:$0xf]
        %v378 = vld [vmem:[%s302 + $0x44] sm:$0xf]
        %v379 = vld [vmem:[%s302 + $0x48] sm:$0xf]
        %v380 = vld [vmem:[%s302 + $0x4c] sm:$0xf]
        %v381 = vld [vmem:[%s302 + $0x50] sm:$0xf]
        %v382 = vld [vmem:[%s302 + $0x54] sm:$0xf]
        %v383 = vld [vmem:[%s302 + $0x58] sm:$0xf]
        %v384 = vld [vmem:[%s302 + $0x5c] sm:$0xf]
        %v385 = vld [vmem:[%s302 + $0x60] sm:$0xf]
        %v386 = vld [vmem:[%s302 + $0x64] sm:$0xf]
        %v387 = vld [vmem:[%s302 + $0x68] sm:$0xf]
        %v388 = vld [vmem:[%s302 + $0x6c] sm:$0xf]
        %v389 = vld [vmem:[%s302 + $0x70] sm:$0xf]
        %v390 = vld [vmem:[%s302 + $0x74] sm:$0xf]
        %v391 = vld [vmem:[%s302 + $0x78] sm:$0xf]
        %v392 = vld [vmem:[%s302 + $0x7c] sm:$0xf]
        %v393 = vld [vmem:[#allocation8] sm:$0xf]
        %v394 = vld [vmem:[#allocation8 + $0x4] sm:$0xf]
        %v395 = vld [vmem:[#allocation8 + $0x8] sm:$0xf]
        %v396 = vld [vmem:[#allocation8 + $0xc] sm:$0xf]
        %v397 = vld [vmem:[#allocation8 + $0x10] sm:$0xf]
        %v398 = vld [vmem:[#allocation8 + $0x14] sm:$0xf]
        %v399 = vld [vmem:[#allocation8 + $0x18] sm:$0xf]
        %v400 = vld [vmem:[#allocation8 + $0x1c] sm:$0xf]
        %v401 = vld [vmem:[#allocation8 + $0x20] sm:$0xf]
        %v402 = vld [vmem:[#allocation8 + $0x24] sm:$0xf]
        %v403 = vld [vmem:[#allocation8 + $0x28] sm:$0xf]
        %v404 = vld [vmem:[#allocation8 + $0x2c] sm:$0xf]
        %v405 = vld [vmem:[#allocation8 + $0x30] sm:$0xf]
        %v406 = vld [vmem:[#allocation8 + $0x34] sm:$0xf]
        %v407 = vld [vmem:[#allocation8 + $0x38] sm:$0xf]
        %v408 = vld [vmem:[#allocation8 + $0x3c] sm:$0xf]
        %v409 = vld [vmem:[%s3] sm:$0x1]
        %v411 = vlaneseq
        %v412 = vshrl.u32 %v411, 7
        %v413 = vsub.s32 0, %v412
        %v414 = vrot.slane %v409, %v413
        %v448 = vunpack.c.l.b16 %v361
        %v449 = vunpack.c.l.b16 %v362
        %v450 = vunpack.c.l.b16 %v363
        %v451 = vunpack.c.l.b16 %v364
        %v452 = vunpack.c.l.b16 %v365
        %v453 = vunpack.c.l.b16 %v366
        %v454 = vunpack.c.l.b16 %v367
        %v455 = vunpack.c.l.b16 %v368
        %v456 = vunpack.c.l.b16 %v369
        %v457 = vunpack.c.l.b16 %v370
        %v458 = vunpack.c.l.b16 %v371
        %v459 = vunpack.c.l.b16 %v372
        %v460 = vunpack.c.l.b16 %v373
        %v461 = vunpack.c.l.b16 %v374
        %v462 = vunpack.c.l.b16 %v375
        %v463 = vunpack.c.l.b16 %v376
        %v464 = vunpack.c.l.b16 %v377
        %v465 = vunpack.c.l.b16 %v378
        %v466 = vunpack.c.l.b16 %v379
        %v467 = vunpack.c.l.b16 %v380
        %v468 = vunpack.c.l.b16 %v381
        %v469 = vunpack.c.l.b16 %v382
        %v470 = vunpack.c.l.b16 %v383
        %v471 = vunpack.c.l.b16 %v384
        %v472 = vunpack.c.l.b16 %v385
        %v473 = vunpack.c.l.b16 %v386
        %v474 = vunpack.c.l.b16 %v387
        %v475 = vunpack.c.l.b16 %v388
        %v476 = vunpack.c.l.b16 %v389
        %v477 = vunpack.c.l.b16 %v390
        %v478 = vunpack.c.l.b16 %v391
        %v479 = vunpack.c.l.b16 %v392
        %v480 = vpack.c.b16 %v449, %v448
        %v481 = vpack.c.b16 %v451, %v450
        %v482 = vpack.c.b16 %v453, %v452
        %v483 = vpack.c.b16 %v455, %v454
        %v484 = vpack.c.b16 %v457, %v456
        %v485 = vpack.c.b16 %v459, %v458
        %v486 = vpack.c.b16 %v461, %v460
        %v487 = vpack.c.b16 %v463, %v462
        %v488 = vpack.c.b16 %v465, %v464
        %v489 = vpack.c.b16 %v467, %v466
        %v490 = vpack.c.b16 %v469, %v468
        %v491 = vpack.c.b16 %v471, %v470
        %v492 = vpack.c.b16 %v473, %v472
        %v493 = vpack.c.b16 %v475, %v474
        %v494 = vpack.c.b16 %v477, %v476
        %v495 = vpack.c.b16 %v479, %v478
        %v528 = vunpack.c.l.b16 %v393
        %v529 = vunpack.c.l.b16 %v394
        %v530 = vunpack.c.l.b16 %v395
        %v531 = vunpack.c.l.b16 %v396
        %v532 = vunpack.c.l.b16 %v397
        %v533 = vunpack.c.l.b16 %v398
        %v534 = vunpack.c.l.b16 %v399
        %v535 = vunpack.c.l.b16 %v400
        %v536 = vunpack.c.l.b16 %v401
        %v537 = vunpack.c.l.b16 %v402
        %v538 = vunpack.c.l.b16 %v403
        %v539 = vunpack.c.l.b16 %v404
        %v540 = vunpack.c.l.b16 %v405
        %v541 = vunpack.c.l.b16 %v406
        %v542 = vunpack.c.l.b16 %v407
        %v543 = vunpack.c.l.b16 %v408
        %v544 = vpack.c.b16 %v529, %v528
        %v545 = vpack.c.b16 %v531, %v530
        %v546 = vpack.c.b16 %v533, %v532
        %v547 = vpack.c.b16 %v535, %v534
        %v548 = vpack.c.b16 %v537, %v536
        %v549 = vpack.c.b16 %v539, %v538
        %v550 = vpack.c.b16 %v541, %v540
        %v551 = vpack.c.b16 %v543, %v542
        %560 = vmatprep.subr.bf16.mxu0 0
        %561 = vmatpush1.bf16.msra.mxu0 %v544
        %562 = vmatprep.subr.bf16.mxu0 0
        %563 = vmatpush1.bf16.msra.mxu0 %v545
        %564 = vmatprep.subr.bf16.mxu0 0
        %565 = vmatpush1.bf16.msra.mxu0 %v546
        %566 = vmatprep.subr.bf16.mxu0 0
        %567 = vmatpush1.bf16.msra.mxu0 %v547
        %568 = vmatprep.subr.bf16.mxu0 0
        %569 = vmatpush1.bf16.msra.mxu0 %v548
        %570 = vmatprep.subr.bf16.mxu0 0
        %571 = vmatpush1.bf16.msra.mxu0 %v549
        %572 = vmatprep.subr.bf16.mxu0 0
        %573 = vmatpush1.bf16.msra.mxu0 %v550
        %574 = vmatprep.subr.bf16.mxu0 0
        %575 = vmatpush1.bf16.msra.mxu0 %v551
        %576 = vmatprep.subr.bf16.mxu0 0
        %577 = vmatpush1.bf16.msra.mxu0 0
        %578 = vmatprep.subr.bf16.mxu0 0
        %579 = vmatpush1.bf16.msra.mxu0 0
        %580 = vmatprep.subr.bf16.mxu0 0
        %581 = vmatpush1.bf16.msra.mxu0 0
        %582 = vmatprep.subr.bf16.mxu0 0
        %583 = vmatpush1.bf16.msra.mxu0 0
        %584 = vmatprep.subr.bf16.mxu0 0
        %585 = vmatpush1.bf16.msra.mxu0 0
        %586 = vmatprep.subr.bf16.mxu0 0
        %587 = vmatpush1.bf16.msra.mxu0 0
        %588 = vmatprep.subr.bf16.mxu0 0
        %589 = vmatpush1.bf16.msra.mxu0 0
        %590 = vmatprep.subr.bf16.mxu0 0
        %591 = vmatpush1.bf16.msra.mxu0 0
        %592 = vmatprep.mubr.bf16.mxu0 0
        %593 = vmatmul.mubr.bf16.gmra.mrb[0].mxu0 %v480
        %v594 = vpop.f32.mrb[0].mxu0
        %v595 = vadd.f32 %v414, %v594
        %v596 = vpop.f32.mrb[0].mxu0
        %v597 = vpop.f32.mrb[0].mxu0
        %v598 = vadd.f32 %v414, %v597
        %v599 = vpop.f32.mrb[0].mxu0
        %600 = vmatprep.mubr.bf16.mxu0 0
        %601 = vmatmul.mubr.bf16.gmra.mrb[0].mxu0 %v481
        %v602 = vpop.f32.mrb[0].mxu0
        %v603 = vadd.f32 %v414, %v602
        %v604 = vpop.f32.mrb[0].mxu0
        %v605 = vpop.f32.mrb[0].mxu0
        %v606 = vadd.f32 %v414, %v605
        %v607 = vpop.f32.mrb[0].mxu0
        %608 = vmatprep.mubr.bf16.mxu0 0
        %609 = vmatmul.mubr.bf16.gmra.mrb[0].mxu0 %v482
        %v610 = vpop.f32.mrb[0].mxu0
        %v611 = vadd.f32 %v414, %v610
        %v612 = vpop.f32.mrb[0].mxu0
        %v613 = vpop.f32.mrb[0].mxu0
        %v614 = vadd.f32 %v414, %v613
        %v615 = vpop.f32.mrb[0].mxu0
        %616 = vmatprep.mubr.bf16.mxu0 0
        %617 = vmatmul.mubr.bf16.gmra.mrb[0].mxu0 %v483
        %v618 = vpop.f32.mrb[0].mxu0
        %v619 = vadd.f32 %v414, %v618
        %v620 = vpop.f32.mrb[0].mxu0
        %v621 = vpop.f32.mrb[0].mxu0
        %v622 = vadd.f32 %v414, %v621
        %v623 = vpop.f32.mrb[0].mxu0
        %624 = vmatprep.mubr.bf16.mxu0 0
        %625 = vmatmul.mubr.bf16.gmra.mrb[0].mxu0 %v484
        %v626 = vpop.f32.mrb[0].mxu0
        %v627 = vadd.f32 %v414, %v626
        %v628 = vpop.f32.mrb[0].mxu0
        %v629 = vpop.f32.mrb[0].mxu0
        %v630 = vadd.f32 %v414, %v629
        %v631 = vpop.f32.mrb[0].mxu0
        %632 = vmatprep.mubr.bf16.mxu0 0
        %633 = vmatmul.mubr.bf16.gmra.mrb[0].mxu0 %v485
        %v634 = vpop.f32.mrb[0].mxu0
        %v635 = vadd.f32 %v414, %v634
        %v636 = vpop.f32.mrb[0].mxu0
        %v637 = vpop.f32.mrb[0].mxu0
        %v638 = vadd.f32 %v414, %v637
        %v639 = vpop.f32.mrb[0].mxu0
        %640 = vmatprep.mubr.bf16.mxu0 0
        %641 = vmatmul.mubr.bf16.gmra.mrb[0].mxu0 %v486
        %v642 = vpop.f32.mrb[0].mxu0
        %v643 = vadd.f32 %v414, %v642
        %v644 = vpop.f32.mrb[0].mxu0
        %v645 = vpop.f32.mrb[0].mxu0
        %v646 = vadd.f32 %v414, %v645
        %v647 = vpop.f32.mrb[0].mxu0
        %648 = vmatprep.mubr.bf16.mxu0 0
        %649 = vmatmul.mubr.bf16.gmra.mrb[0].mxu0 %v487
        %v650 = vpop.f32.mrb[0].mxu0
        %v651 = vadd.f32 %v414, %v650
        %v652 = vpop.f32.mrb[0].mxu0
        %v653 = vpop.f32.mrb[0].mxu0
        %v654 = vadd.f32 %v414, %v653
        %v655 = vpop.f32.mrb[0].mxu0
        %656 = vmatprep.mubr.bf16.mxu0 0
        %657 = vmatmul.mubr.bf16.gmra.mrb[0].mxu0 %v488
        %v658 = vpop.f32.mrb[0].mxu0
        %v659 = vadd.f32 %v414, %v658
        %v660 = vpop.f32.mrb[0].mxu0
        %v661 = vpop.f32.mrb[0].mxu0
        %v662 = vadd.f32 %v414, %v661
        %v663 = vpop.f32.mrb[0].mxu0
        %664 = vmatprep.mubr.bf16.mxu0 0
        %665 = vmatmul.mubr.bf16.gmra.mrb[0].mxu0 %v489
        %v666 = vpop.f32.mrb[0].mxu0
        %v667 = vadd.f32 %v414, %v666
        %v668 = vpop.f32.mrb[0].mxu0
        %v669 = vpop.f32.mrb[0].mxu0
        %v670 = vadd.f32 %v414, %v669
        %v671 = vpop.f32.mrb[0].mxu0
        %672 = vmatprep.mubr.bf16.mxu0 0
        %673 = vmatmul.mubr.bf16.gmra.mrb[0].mxu0 %v490
        %v674 = vpop.f32.mrb[0].mxu0
        %v675 = vadd.f32 %v414, %v674
        %v676 = vpop.f32.mrb[0].mxu0
        %v677 = vpop.f32.mrb[0].mxu0
        %v678 = vadd.f32 %v414, %v677
        %v679 = vpop.f32.mrb[0].mxu0
        %680 = vmatprep.mubr.bf16.mxu0 0
        %681 = vmatmul.mubr.bf16.gmra.mrb[0].mxu0 %v491
        %v682 = vpop.f32.mrb[0].mxu0
        %v683 = vadd.f32 %v414, %v682
        %v684 = vpop.f32.mrb[0].mxu0
        %v685 = vpop.f32.mrb[0].mxu0
        %v686 = vadd.f32 %v414, %v685
        %v687 = vpop.f32.mrb[0].mxu0
        %688 = vmatprep.mubr.bf16.mxu0 0
        %689 = vmatmul.mubr.bf16.gmra.mrb[0].mxu0 %v492
        %v690 = vpop.f32.mrb[0].mxu0
        %v691 = vadd.f32 %v414, %v690
        %v692 = vpop.f32.mrb[0].mxu0
        %v693 = vpop.f32.mrb[0].mxu0
        %v694 = vadd.f32 %v414, %v693
        %v695 = vpop.f32.mrb[0].mxu0
        %696 = vmatprep.mubr.bf16.mxu0 0
        %697 = vmatmul.mubr.bf16.gmra.mrb[0].mxu0 %v493
        %v698 = vpop.f32.mrb[0].mxu0
        %v699 = vadd.f32 %v414, %v698
        %v700 = vpop.f32.mrb[0].mxu0
        %v701 = vpop.f32.mrb[0].mxu0
        %v702 = vadd.f32 %v414, %v701
        %v703 = vpop.f32.mrb[0].mxu0
        %704 = vmatprep.mubr.bf16.mxu0 0
        %705 = vmatmul.mubr.bf16.gmra.mrb[0].mxu0 %v494
        %v706 = vpop.f32.mrb[0].mxu0
        %v707 = vadd.f32 %v414, %v706
        %v708 = vpop.f32.mrb[0].mxu0
        %v709 = vpop.f32.mrb[0].mxu0
        %v710 = vadd.f32 %v414, %v709
        %v711 = vpop.f32.mrb[0].mxu0
        %712 = vmatprep.mubr.bf16.mxu0 0
        %713 = vmatmul.mubr.bf16.gmra.mrb[0].mxu0 %v495
        %v714 = vpop.f32.mrb[0].mxu0
        %v715 = vadd.f32 %v414, %v714
        %v716 = vpop.f32.mrb[0].mxu0
        %v717 = vpop.f32.mrb[0].mxu0
        %v718 = vadd.f32 %v414, %v717
        %v719 = vpop.f32.mrb[0].mxu0
        %720 = vdwg.mxu0
        %v721 = vtanh.pop %v595
        %v722 = vtanh.pop %v598
        %v723 = vtanh.pop %v603
        %v724 = vtanh.pop %v606
        %v725 = vtanh.pop %v611
        %v726 = vtanh.pop %v614
        %v727 = vtanh.pop %v619
        %v728 = vtanh.pop %v622
        %v729 = vtanh.pop %v627
        %v730 = vtanh.pop %v630
        %v731 = vtanh.pop %v635
        %v732 = vtanh.pop %v638
        %v733 = vtanh.pop %v643
        %v734 = vtanh.pop %v646
        %v735 = vtanh.pop %v651
        %v736 = vtanh.pop %v654
        %v737 = vtanh.pop %v659
        %v738 = vtanh.pop %v662
        %v739 = vtanh.pop %v667
        %v740 = vtanh.pop %v670
        %v741 = vtanh.pop %v675
        %v742 = vtanh.pop %v678
        %v743 = vtanh.pop %v683
        %v744 = vtanh.pop %v686
        %v745 = vtanh.pop %v691
        %v746 = vtanh.pop %v694
        %v747 = vtanh.pop %v699
        %v748 = vtanh.pop %v702
        %v749 = vtanh.pop %v707
        %v750 = vtanh.pop %v710
        %v751 = vtanh.pop %v715
        %v752 = vtanh.pop %v718
        %s753 = smul.u32 %s32, 8
        %s754 = scalar_lea.vmem %s311, %s753 [#allocation6]
        %v755 = vld [vmem:[%s754] sm:$0xff]
        %v756 = vld [vmem:[#allocation2] sm:$0xff]
        %v757 = vlaneseq
        %v758 = vshrl.u32 %v757, 7
        %v759 = vsub.s32 0, %v758
        %v760 = vrot.slane %v755, %v759
        %762 = vbcast.lane.b32.xlu0 %v760, 256
        %v763 = vpop.permute.xlu0 %762
        %s765 = sor.u32 256, 8
        %766 = vbcast.lane.b32.xlu0 %v760, %s765
        %v767 = vpop.permute.xlu0 %766
        %s769 = sor.u32 256, 16
        %770 = vbcast.lane.b32.xlu0 %v760, %s769
        %v771 = vpop.permute.xlu0 %770
        %s773 = sor.u32 256, 24
        %774 = vbcast.lane.b32.xlu0 %v760, %s773
        %v775 = vpop.permute.xlu0 %774
        %v776 = vlaneseq
        %v777 = vshrl.u32 %v776, 7
        %v778 = vsub.s32 1, %v777
        %v779 = vrot.slane %v755, %v778
        %781 = vbcast.lane.b32.xlu0 %v779, 256
        %v782 = vpop.permute.xlu0 %781
        %s784 = sor.u32 256, 8
        %785 = vbcast.lane.b32.xlu0 %v779, %s784
        %v786 = vpop.permute.xlu0 %785
        %s788 = sor.u32 256, 16
        %789 = vbcast.lane.b32.xlu0 %v779, %s788
        %v790 = vpop.permute.xlu0 %789
        %s792 = sor.u32 256, 24
        %793 = vbcast.lane.b32.xlu0 %v779, %s792
        %v794 = vpop.permute.xlu0 %793
        %v795 = vlaneseq
        %v796 = vshrl.u32 %v795, 7
        %v797 = vsub.s32 2, %v796
        %v798 = vrot.slane %v755, %v797
        %800 = vbcast.lane.b32.xlu0 %v798, 256
        %v801 = vpop.permute.xlu0 %800
        %s803 = sor.u32 256, 8
        %804 = vbcast.lane.b32.xlu0 %v798, %s803
        %v805 = vpop.permute.xlu0 %804
        %s807 = sor.u32 256, 16
        %808 = vbcast.lane.b32.xlu0 %v798, %s807
        %v809 = vpop.permute.xlu0 %808
        %s811 = sor.u32 256, 24
        %812 = vbcast.lane.b32.xlu0 %v798, %s811
        %v813 = vpop.permute.xlu0 %812
        %v814 = vlaneseq
        %v815 = vshrl.u32 %v814, 7
        %v816 = vsub.s32 3, %v815
        %v817 = vrot.slane %v755, %v816
        %819 = vbcast.lane.b32.xlu0 %v817, 256
        %v820 = vpop.permute.xlu0 %819
        %s822 = sor.u32 256, 8
        %823 = vbcast.lane.b32.xlu0 %v817, %s822
        %v824 = vpop.permute.xlu0 %823
        %s826 = sor.u32 256, 16
        %827 = vbcast.lane.b32.xlu0 %v817, %s826
        %v828 = vpop.permute.xlu0 %827
        %s830 = sor.u32 256, 24
        %831 = vbcast.lane.b32.xlu0 %v817, %s830
        %v832 = vpop.permute.xlu0 %831
        %v833 = vlaneseq
        %v834 = vshrl.u32 %v833, 7
        %v835 = vsub.s32 4, %v834
        %v836 = vrot.slane %v755, %v835
        %838 = vbcast.lane.b32.xlu0 %v836, 256
        %v839 = vpop.permute.xlu0 %838
        %s841 = sor.u32 256, 8
        %842 = vbcast.lane.b32.xlu0 %v836, %s841
        %v843 = vpop.permute.xlu0 %842
        %s845 = sor.u32 256, 16
        %846 = vbcast.lane.b32.xlu0 %v836, %s845
        %v847 = vpop.permute.xlu0 %846
        %s849 = sor.u32 256, 24
        %850 = vbcast.lane.b32.xlu0 %v836, %s849
        %v851 = vpop.permute.xlu0 %850
        %v852 = vlaneseq
        %v853 = vshrl.u32 %v852, 7
        %v854 = vsub.s32 5, %v853
        %v855 = vrot.slane %v755, %v854
        %857 = vbcast.lane.b32.xlu0 %v855, 256
        %v858 = vpop.permute.xlu0 %857
        %s860 = sor.u32 256, 8
        %861 = vbcast.lane.b32.xlu0 %v855, %s860
        %v862 = vpop.permute.xlu0 %861
        %s864 = sor.u32 256, 16
        %865 = vbcast.lane.b32.xlu0 %v855, %s864
        %v866 = vpop.permute.xlu0 %865
        %s868 = sor.u32 256, 24
        %869 = vbcast.lane.b32.xlu0 %v855, %s868
        %v870 = vpop.permute.xlu0 %869
        %v871 = vlaneseq
        %v872 = vshrl.u32 %v871, 7
        %v873 = vsub.s32 6, %v872
        %v874 = vrot.slane %v755, %v873
        %876 = vbcast.lane.b32.xlu0 %v874, 256
        %v877 = vpop.permute.xlu0 %876
        %s879 = sor.u32 256, 8
        %880 = vbcast.lane.b32.xlu0 %v874, %s879
        %v881 = vpop.permute.xlu0 %880
        %s883 = sor.u32 256, 16
        %884 = vbcast.lane.b32.xlu0 %v874, %s883
        %v885 = vpop.permute.xlu0 %884
        %s887 = sor.u32 256, 24
        %888 = vbcast.lane.b32.xlu0 %v874, %s887
        %v889 = vpop.permute.xlu0 %888
        %v890 = vlaneseq
        %v891 = vshrl.u32 %v890, 7
        %v892 = vsub.s32 7, %v891
        %v893 = vrot.slane %v755, %v892
        %895 = vbcast.lane.b32.xlu0 %v893, 256
        %v896 = vpop.permute.xlu0 %895
        %s898 = sor.u32 256, 8
        %899 = vbcast.lane.b32.xlu0 %v893, %s898
        %v900 = vpop.permute.xlu0 %899
        %s902 = sor.u32 256, 16
        %903 = vbcast.lane.b32.xlu0 %v893, %s902
        %v904 = vpop.permute.xlu0 %903
        %s906 = sor.u32 256, 24
        %907 = vbcast.lane.b32.xlu0 %v893, %s906
        %v908 = vpop.permute.xlu0 %907
        %v909 = vmul.f32 %v721, %v763
        %v910 = vmul.f32 %v722, %v767
        %v911 = vmul.f32 %v723, %v771
        %v912 = vmul.f32 %v724, %v775
        %v913 = vmul.f32 %v725, %v782
        %v914 = vmul.f32 %v726, %v786
        %v915 = vmul.f32 %v727, %v790
        %v916 = vmul.f32 %v728, %v794
        %v917 = vmul.f32 %v729, %v801
        %v918 = vmul.f32 %v730, %v805
        %v919 = vmul.f32 %v731, %v809
        %v920 = vmul.f32 %v732, %v813
        %v921 = vmul.f32 %v733, %v820
        %v922 = vmul.f32 %v734, %v824
        %v923 = vmul.f32 %v735, %v828
        %v924 = vmul.f32 %v736, %v832
        %v925 = vmul.f32 %v737, %v839
        %v926 = vmul.f32 %v738, %v843
        %v927 = vmul.f32 %v739, %v847
        %v928 = vmul.f32 %v740, %v851
        %v929 = vmul.f32 %v741, %v858
        %v930 = vmul.f32 %v742, %v862
        %v931 = vmul.f32 %v743, %v866
        %v932 = vmul.f32 %v744, %v870
        %v933 = vmul.f32 %v745, %v877
        %v934 = vmul.f32 %v746, %v881
        %v935 = vmul.f32 %v747, %v885
        %v936 = vmul.f32 %v748, %v889
        %v937 = vmul.f32 %v749, %v896
        %v938 = vmul.f32 %v750, %v900
        %v939 = vmul.f32 %v751, %v904
        %v940 = vmul.f32 %v752, %v908
        %v941 = vadd.f32 %v909, %v910
        %v942 = vadd.f32 %v941, %v911
        %v943 = vadd.f32 %v942, %v912
        %v944 = vrot.slane %v943, 4
        %v945 = vadd.f32 %v943, %v944
        %v946 = vrot.slane %v945, 2
        %v947 = vadd.f32 %v945, %v946
        %v948 = vrot.slane %v947, 1
        %v949 = vadd.f32 %v947, %v948
        %v950 = vadd.f32 %v913, %v914
        %v951 = vadd.f32 %v950, %v915
        %v952 = vadd.f32 %v951, %v916
        %v953 = vrot.slane %v952, 4
        %v954 = vadd.f32 %v952, %v953
        %v955 = vrot.slane %v954, 2
        %v956 = vadd.f32 %v954, %v955
        %v957 = vrot.slane %v956, 1
        %v958 = vadd.f32 %v956, %v957
        %v959 = vadd.f32 %v917, %v918
        %v960 = vadd.f32 %v959, %v919
        %v961 = vadd.f32 %v960, %v920
        %v962 = vrot.slane %v961, 4
        %v963 = vadd.f32 %v961, %v962
        %v964 = vrot.slane %v963, 2
        %v965 = vadd.f32 %v963, %v964
        %v966 = vrot.slane %v965, 1
        %v967 = vadd.f32 %v965, %v966
        %v968 = vadd.f32 %v921, %v922
        %v969 = vadd.f32 %v968, %v923
        %v970 = vadd.f32 %v969, %v924
        %v971 = vrot.slane %v970, 4
        %v972 = vadd.f32 %v970, %v971
        %v973 = vrot.slane %v972, 2
        %v974 = vadd.f32 %v972, %v973
        %v975 = vrot.slane %v974, 1
        %v976 = vadd.f32 %v974, %v975
        %v977 = vadd.f32 %v925, %v926
        %v978 = vadd.f32 %v977, %v927
        %v979 = vadd.f32 %v978, %v928
        %v980 = vrot.slane %v979, 4
        %v981 = vadd.f32 %v979, %v980
        %v982 = vrot.slane %v981, 2
        %v983 = vadd.f32 %v981, %v982
        %v984 = vrot.slane %v983, 1
        %v985 = vadd.f32 %v983, %v984
        %v986 = vadd.f32 %v929, %v930
        %v987 = vadd.f32 %v986, %v931
        %v988 = vadd.f32 %v987, %v932
        %v989 = vrot.slane %v988, 4
        %v990 = vadd.f32 %v988, %v989
        %v991 = vrot.slane %v990, 2
        %v992 = vadd.f32 %v990, %v991
        %v993 = vrot.slane %v992, 1
        %v994 = vadd.f32 %v992, %v993
        %v995 = vadd.f32 %v933, %v934
        %v996 = vadd.f32 %v995, %v935
        %v997 = vadd.f32 %v996, %v936
        %v998 = vrot.slane %v997, 4
        %v999 = vadd.f32 %v997, %v998
        %v1000 = vrot.slane %v999, 2
        %v1001 = vadd.f32 %v999, %v1000
        %v1002 = vrot.slane %v1001, 1
        %v1003 = vadd.f32 %v1001, %v1002
        %v1004 = vadd.f32 %v937, %v938
        %v1005 = vadd.f32 %v1004, %v939
        %v1006 = vadd.f32 %v1005, %v940
        %v1007 = vrot.slane %v1006, 4
        %v1008 = vadd.f32 %v1006, %v1007
        %v1009 = vrot.slane %v1008, 2
        %v1010 = vadd.f32 %v1008, %v1009
        %v1011 = vrot.slane %v1010, 1
        %v1012 = vadd.f32 %v1010, %v1011
        %vm1021 = vcmask 1041409
        %v1022 = vsel %vm1021, %v958, %v949
        %vm1023 = vcmask 1042434
        %v1024 = vsel %vm1023, %v967, %v1022
        %vm1025 = vcmask 1043459
        %v1026 = vsel %vm1025, %v976, %v1024
        %vm1027 = vcmask 1044484
        %v1028 = vsel %vm1027, %v985, %v1026
        %vm1029 = vcmask 1045509
        %v1030 = vsel %vm1029, %v994, %v1028
        %vm1031 = vcmask 1046534
        %v1032 = vsel %vm1031, %v1003, %v1030
        %vm1033 = vcmask 1047559
        %v1034 = vsel %vm1033, %v1012, %v1032
        %v1036 = vadd.f32 %v756, %v1034
        %1037 = vst [vmem:[#allocation2] sm:$0xff] %v1036
        // Predicated region
        $region65: #{tpu_custom_call.1} parent=43 // pred_check
          %p1038 = pneg %p356
        $region66: #{tpu_custom_call.1} parent=43 // pred_check_branch
          %1040 = sbr.rel (%p1038) target = $region68
        $region67: #{tpu_custom_call.1} parent=43 // pred_region
          %v1041 = vld [vmem:[#allocation2] sm:$0xff]
          %v1042 = vpack.c.bf16 %v1041, %v1041
          %v1043 = vld [vmem:[#allocation9] sm:$0xf]
          %v1044 = vld [vmem:[#allocation9 + $0x4] sm:$0xf]
          %v1045 = vld [vmem:[#allocation9 + $0x8] sm:$0xf]
          %v1046 = vld [vmem:[#allocation9 + $0xc] sm:$0xf]
          %v1047 = vld [vmem:[#allocation9 + $0x10] sm:$0xf]
          %v1048 = vld [vmem:[#allocation9 + $0x14] sm:$0xf]
          %v1049 = vld [vmem:[#allocation9 + $0x18] sm:$0xf]
          %v1050 = vld [vmem:[#allocation9 + $0x1c] sm:$0xf]
          %v1051 = vld [vmem:[#allocation9 + $0x20] sm:$0xf]
          %v1052 = vld [vmem:[#allocation9 + $0x24] sm:$0xf]
          %v1053 = vld [vmem:[#allocation9 + $0x28] sm:$0xf]
          %v1054 = vld [vmem:[#allocation9 + $0x2c] sm:$0xf]
          %v1055 = vld [vmem:[#allocation9 + $0x30] sm:$0xf]
          %v1056 = vld [vmem:[#allocation9 + $0x34] sm:$0xf]
          %v1057 = vld [vmem:[#allocation9 + $0x38] sm:$0xf]
          %v1058 = vld [vmem:[#allocation9 + $0x3c] sm:$0xf]
          %v1059 = vld [vmem:[%s5] sm:$0x1]
          %v1061 = vlaneseq
          %v1062 = vshrl.u32 %v1061, 7
          %v1063 = vsub.s32 0, %v1062
          %v1064 = vrot.slane %v1059, %v1063
          %v1082 = vunpack.c.l.b16 %v1043
          %v1083 = vunpack.c.l.b16 %v1044
          %v1084 = vunpack.c.l.b16 %v1045
          %v1085 = vunpack.c.l.b16 %v1046
          %v1086 = vunpack.c.l.b16 %v1047
          %v1087 = vunpack.c.l.b16 %v1048
          %v1088 = vunpack.c.l.b16 %v1049
          %v1089 = vunpack.c.l.b16 %v1050
          %v1090 = vunpack.c.l.b16 %v1051
          %v1091 = vunpack.c.l.b16 %v1052
          %v1092 = vunpack.c.l.b16 %v1053
          %v1093 = vunpack.c.l.b16 %v1054
          %v1094 = vunpack.c.l.b16 %v1055
          %v1095 = vunpack.c.l.b16 %v1056
          %v1096 = vunpack.c.l.b16 %v1057
          %v1097 = vunpack.c.l.b16 %v1058
          %v1098 = vpack.c.b16 %v1083, %v1082
          %v1099 = vpack.c.b16 %v1085, %v1084
          %v1100 = vpack.c.b16 %v1087, %v1086
          %v1101 = vpack.c.b16 %v1089, %v1088
          %v1102 = vpack.c.b16 %v1091, %v1090
          %v1103 = vpack.c.b16 %v1093, %v1092
          %v1104 = vpack.c.b16 %v1095, %v1094
          %v1105 = vpack.c.b16 %v1097, %v1096
          %1114 = vmatprep.subr.bf16.mxu0 0
          %1115 = vmatpush1.bf16.msra.mxu0 %v1098
          %1116 = vmatprep.subr.bf16.mxu0 0
          %1117 = vmatpush1.bf16.msra.mxu0 %v1099
          %1118 = vmatprep.subr.bf16.mxu0 0
          %1119 = vmatpush1.bf16.msra.mxu0 %v1100
          %1120 = vmatprep.subr.bf16.mxu0 0
          %1121 = vmatpush1.bf16.msra.mxu0 %v1101
          %1122 = vmatprep.subr.bf16.mxu0 0
          %1123 = vmatpush1.bf16.msra.mxu0 %v1102
          %1124 = vmatprep.subr.bf16.mxu0 0
          %1125 = vmatpush1.bf16.msra.mxu0 %v1103
          %1126 = vmatprep.subr.bf16.mxu0 0
          %1127 = vmatpush1.bf16.msra.mxu0 %v1104
          %1128 = vmatprep.subr.bf16.mxu0 0
          %1129 = vmatpush1.bf16.msra.mxu0 %v1105
          %1130 = vmatprep.subr.bf16.mxu0 0
          %1131 = vmatpush1.bf16.msra.mxu0 0
          %1132 = vmatprep.subr.bf16.mxu0 0
          %1133 = vmatpush1.bf16.msra.mxu0 0
          %1134 = vmatprep.subr.bf16.mxu0 0
          %1135 = vmatpush1.bf16.msra.mxu0 0
          %1136 = vmatprep.subr.bf16.mxu0 0
          %1137 = vmatpush1.bf16.msra.mxu0 0
          %1138 = vmatprep.subr.bf16.mxu0 0
          %1139 = vmatpush1.bf16.msra.mxu0 0
          %1140 = vmatprep.subr.bf16.mxu0 0
          %1141 = vmatpush1.bf16.msra.mxu0 0
          %1142 = vmatprep.subr.bf16.mxu0 0
          %1143 = vmatpush1.bf16.msra.mxu0 0
          %1144 = vmatprep.subr.bf16.mxu0 0
          %1145 = vmatpush1.bf16.msra.mxu0 0
          %1146 = vmatprep.mubr.bf16.mxu0 0
          %1147 = vmatmul.mubr.bf16.gmra.mrb[0].mxu0 %v1042
          %v1148 = vpop.f32.mrb[0].mxu0
          %v1149 = vadd.f32 %v1064, %v1148
          %v1150 = vpop.f32.mrb[0].mxu0
          %v1151 = vpop.f32.mrb[0].mxu0
          %v1152 = vpop.f32.mrb[0].mxu0
          %1153 = vdwg.mxu0
          %v1154 = vmul.f32 %v1149, 0.5
          %v1155 = vtanh.pop %v1154
          %v1156 = vadd.f32 %v1155, 1.0
          %v1157 = vmul.f32 %v1156, 0.5
          %1158 = vst [vmem:[%s352] sm:$0xff] %v1157
        $region68: #{tpu_custom_call.1} parent=43 // pred_fallthru
          _
        %s1159 = sand.u32 %s185, 1
        %s1160 = scalar_lea.sflag [#allocation5], %s1159
        %s1161 = sand.u32 %s185, 1
        %s1162 = smul.addr %s1161, 8
        %s1163 = scalar_lea.vmem [#allocation11], %s1162
        // Predicated region
        $region69: #{tpu_custom_call.1} parent=43 // pred_check
          %p1164 = pneg %p195
        $region70: #{tpu_custom_call.1} parent=43 // pred_check_branch
          %1166 = sbr.rel (%p1164) target = $region72
        $region71: #{tpu_custom_call.1} parent=43 // pred_region
          %s1168 = ssub.s32 128, 128
          %1169 = vsyncadd %s1160, %s1168
          %s1170 = smul.addr %s31, 128
          %s1171 = scalar_lea.hbm %s6, %s1170
          %s1173 = sshll.u32 %s1163, 4
          %s1174 = int_to_ptr.vmem [resolvable:$true] %s1173
          %1176 = dma.vmem_to_hbm [thread:$0]  %s1174, 128, %s1171, %s1160
        $region72: #{tpu_custom_call.1} parent=43 // pred_fallthru
          _
      $region44: #{tpu_custom_call.1} parent=5 // pred_fallthru
        _
      %p1177 = scmp.le.s32.totalorder 2, %s22
      // Predicated region
      $region73: #{tpu_custom_call.1} parent=5 // pred_check
        %p1178 = pneg %p1177
      $region74: #{tpu_custom_call.1} parent=5 // pred_check_branch
        %1180 = sbr.rel (%p1178) target = $region76
      $region75: #{tpu_custom_call.1} parent=5 // pred_region
        %s1181 = ssub.s32 %s22, 2
        // Predicated region
        $region77: #{tpu_custom_call.1} parent=75 // pred_check
          %p1182 = pneg %p201
        $region78: #{tpu_custom_call.1} parent=75 // pred_check_branch
          %1184 = sbr.rel (%p1182) target = $region80
        $region79: #{tpu_custom_call.1} parent=75 // pred_region
          %s1185 = sand.u32 %s186, 1
          %s1186 = scalar_lea.sflag [#allocation5], %s1185
          %s1187 = sand.u32 %s186, 1
          %s1188 = smul.addr %s1187, 8
          %s1189 = scalar_lea.vmem [#allocation11], %s1188
          %1190 = dma.done %s1186, 128
        $region80: #{tpu_custom_call.1} parent=75 // pred_fallthru
          _
      $region76: #{tpu_custom_call.1} parent=5 // pred_fallthru
        _
    $region6: #{tpu_custom_call.1} parent=1 // loop_footer
      %s26 = sadd.s32 1, %s22
    $region7: #{tpu_custom_call.1} parent=1 // loop_footer_branch
      %21 = sbr.rel target = $region3
    $region8: #{tpu_custom_call.1} parent=1 // loop_exit
      _
    %1191 = vsyncpa [#allocation4], 1
    %s1192 = scalar_lea.sflag [#allocation4], 1
    %1193 = vsyncpa %s1192, 1
    %1194 = vsyncpa [#allocation7], 1
    %s1195 = scalar_lea.sflag [#allocation7], 1
    %1196 = vsyncpa %s1195, 1
    %1197 = vsyncpa [#allocation10], 1
    %1198 = vsyncpa [#allocation5], 1
    %s1199 = scalar_lea.sflag [#allocation5], 1
    %1200 = vsyncpa %s1199, 1

</llo_original>
